<compile_context>
chip_gen: v5e
topology: v5e:2x2
jax: 0.10.0
libtpu: 0.0.40
codegen_flags: <defaults>
</compile_context>

<pallas_src>
import jax
import jax.numpy as jnp
from jax.experimental import pallas as pl
from jax.experimental.pallas import tpu as pltpu


def _round_up(x: int, m: int) -> int:
    return ((x + m - 1) // m) * m


# ---------------------------------------------------------------------------
# Hot kernel — attention pooling for one block of TB users.
def _user_pool_kernel(idx_ref, htab_ref, srow_ref, out_ref):
    """
    idx_ref : (TB, N)        int32  interest category ids
    htab_ref: (C_pad, M_pad) f32    tanh(fc1(embedding)) per category
                                    (rows >= C and cols >= M are zero)
    srow_ref: (1, C_pad)     f32    per-category additive-attention score
    out_ref : (TB, M_pad)    f32    tanh(attention-pooled rep), cols >= M zero
    """
    idx = idx_ref[...]                                   # (TB, N)
    tb, n_int = idx.shape
    c_pad = htab_ref.shape[0]

    # One-hot over categories (C on the lane axis), built ONCE per block and
    # reused for both the score gather and the weight fold (replaces the two
    # unrolled Python loops of the previous version).
    cat_iota = jax.lax.broadcasted_iota(jnp.int32, (tb, n_int, c_pad), 2)
    onehot = (idx[:, :, None] == cat_iota).astype(jnp.float32)      # (TB,N,C)

    # scores[b, n] = s_tab[idx[b, n]]  — VPU mul + XLU lane reduce.
    scores = jnp.sum(onehot * srow_ref[...][None], axis=2)          # (TB, N)

    # Numerically stable softmax over the N interests; the normalization is
    # deferred until after the matmul (reciprocal touches (TB, 1) once).
    m = jnp.max(scores, axis=-1, keepdims=True)                     # (TB, 1)
    e = jnp.exp(scores - m)                                         # (TB, N)
    denom = jnp.sum(e, axis=-1, keepdims=True)                      # (TB, 1)

    # Fold the un-normalized weights onto categories in a single pass:
    #   cat_e[b, c] = sum_n e[b, n] * [idx[b, n] == c]
    cat_e = jnp.sum(onehot * e[:, :, None], axis=1)                 # (TB, C)

    # One MXU matmul against the zero-padded (C_pad, 128) table gives a
    # lane-dense (TB, 128) result -> unmasked 128-wide stores.
    rep = jnp.dot(cat_e, htab_ref[...], preferred_element_type=jnp.float32)
    out_ref[...] = jnp.tanh(rep * pl.reciprocal(denom, approx=True))
    # both dropout(p=0.2) layers are identity in eval mode


# ---------------------------------------------------------------------------
def user_att_encoder(user_interest_index, cat_table, w1, b1, wa, ba, q_vec,
                     *, user_block=1024):
    """Zeroshot_NPA user_att_encoder forward (eval mode).

    user_interest_index: (B, N) int32 -> returns (B, M) float32.
    Weights are (in_features, out_features); biases / query vector are (1, D).
    """
    B, N = user_interest_index.shape
    C = cat_table.shape[0]
    M = w1.shape[1]

    # ---- stage 1 (plain XLA, runs once, ~0.4 MFLOP): per-category tables ---
    #   h_tab[c] = tanh(cat_table[c] @ W1 + b1)
    #   s_tab[c] = tanh(h_tab[c] @ Wa + ba) . q
    h_tab = jnp.tanh(jnp.dot(cat_table.astype(jnp.float32), w1) + b1)   # (C,M)
    t_tab = jnp.tanh(jnp.dot(h_tab, wa) + ba)                           # (C,Q)
    s_tab = jnp.sum(t_tab * q_vec, axis=-1)                             # (C,)

    # Pad to (8,128)-friendly tiles: categories to a 128-lane multiple and the
    # h columns to a full 128-lane row (zero padding costs no extra vregs and
    # makes the kernel's output stores lane-dense).
    c_pad = _round_up(max(C, 1), 128)
    m_pad = _round_up(max(M, 1), 128)
    h_pad = jnp.zeros((c_pad, m_pad), jnp.float32).at[:C, :M].set(h_tab)
    s_row = jnp.zeros((1, c_pad), jnp.float32).at[0, :C].set(s_tab)

    # ---- stage 2 (Pallas): TB users per grid step ---------------------------
    tb = _round_up(min(user_block, _round_up(max(B, 1), 8)), 8)
    b_pad = _round_up(max(B, 1), tb)
    idx = user_interest_index.astype(jnp.int32)
    if b_pad != B:
        idx = jnp.concatenate(
            [idx, jnp.zeros((b_pad - B, N), jnp.int32)], axis=0)

    out = pl.pallas_call(
        _user_pool_kernel,
        out_shape=jax.ShapeDtypeStruct((b_pad, m_pad), jnp.float32),
        grid_spec=pltpu.PrefetchScalarGridSpec(
            num_scalar_prefetch=0,
            grid=(b_pad // tb,),
            in_specs=[
                # the only batched HBM stream: 4*N bytes per user (indices)
                pl.BlockSpec((tb, N), lambda b: (b, 0)),
                # tiny tables stay VMEM-resident (constant block index)
                pl.BlockSpec((c_pad, m_pad), lambda b: (0, 0)),
                pl.BlockSpec((1, c_pad), lambda b: (0, 0)),
            ],
            out_specs=pl.BlockSpec((tb, m_pad), lambda b: (b, 0)),
        ),
        compiler_params=pltpu.CompilerParams(
            # batch chunks are independent -> eligible for megacore sharding
            # on v7x; (if a trace shows one TC idle, switch this axis to
            # pltpu.CORE_PARALLEL).
            dimension_semantics=("parallel",),
            vmem_limit_bytes=32 * 1024 * 1024),
    )(idx, h_pad, s_row)
    return out[:B, :M]


# ---------------------------------------------------------------------------
def reference(user_interest_index, cat_table, w1, b1, wa, ba, q_vec):
    emb = cat_table[user_interest_index]
    h = jnp.tanh(jnp.einsum("bnd,dm->bnm", emb, w1) + b1)
    t = jnp.tanh(jnp.einsum("bnm,mq->bnq", h, wa) + ba)
    scores = jnp.einsum("bnq,q->bn", t, q_vec[0])
    w = jax.nn.softmax(scores, axis=1)
    rep = jnp.einsum("bn,bnm->bm", w, h)
    return jnp.tanh(rep)


if __name__ == "__main__":
    # hyperparameters consistent with the module's args
    category_num = 50          # args.category_num
    category_dim = 32          # args.category_embedding_dim
    attention_dim = 16         # args.attention_dim
    attention_heads = 2        # args.attention_heads
    multi_dim = attention_dim * attention_heads    # 32
    query_vector_dim = 32      # args.query_vector_dim
    B, N = 2, 8                # batch, interests per user

    key = jax.random.PRNGKey(0)
    k_idx, k_tab, k_w1, k_b1, k_wa, k_ba, k_q = jax.random.split(key, 7)

    user_interest_index = jax.random.randint(
        k_idx, (B, N), 0, category_num, dtype=jnp.int32)
    cat_table = 0.1 * jax.random.normal(
        k_tab, (category_num, category_dim), dtype=jnp.float32)
    w1 = 0.1 * jax.random.normal(
        k_w1, (category_dim, multi_dim), dtype=jnp.float32)
    b1 = 0.1 * jax.random.normal(k_b1, (1, multi_dim), dtype=jnp.float32)
    wa = 0.1 * jax.random.normal(
        k_wa, (multi_dim, query_vector_dim), dtype=jnp.float32)
    ba = 0.1 * jax.random.normal(k_ba, (1, query_vector_dim), dtype=jnp.float32)
    q_vec = 0.1 * jax.random.normal(
        k_q, (1, query_vector_dim), dtype=jnp.float32)

    out = user_att_encoder(user_interest_index, cat_table, w1, b1, wa, ba, q_vec)
    out = jax.block_until_ready(out)

    ref = reference(user_interest_index, cat_table, w1, b1, wa, ba, q_vec)
    assert out.shape == (B, multi_dim)
    # approx=True softmax reciprocal (EUP vrcp) adds up to ~1e-4 relative
    # error, so the check tolerance is relaxed accordingly.
    assert jnp.allclose(out, ref, rtol=1e-3, atol=5e-4), "mismatch vs reference"

    print("KERNEL_OK")
</pallas_src>

<mosaic_0001>
module attributes {stable_mosaic.version = 11 : i64} {
  func.func @_user_pool_kernel(%arg0: i32, %arg1: memref<8x8xi32, #tpu.memory_space<vmem>>, %arg2: memref<128x128xf32, #tpu.memory_space<vmem>>, %arg3: memref<1x128xf32, #tpu.memory_space<vmem>>, %arg4: memref<8x128xf32, #tpu.memory_space<vmem>>) attributes {dimension_semantics = [#tpu.dimension_semantics<parallel>], iteration_bounds = array<i64: 1>, scalar_prefetch = 0 : i64, scratch_operands = 0 : i64, tpu.core_type = #tpu.core_type<tc>, window_params = [{transform_indices = @transform_0, window_bounds = array<i64: 8, 8>}, {pipeline_mode = #tpu.pipeline_mode<synchronous>, transform_indices = @transform_1, window_bounds = array<i64: 128, 128>}, {pipeline_mode = #tpu.pipeline_mode<synchronous>, transform_indices = @transform_2, window_bounds = array<i64: 1, 128>}, {transform_indices = @transform_3, window_bounds = array<i64: 8, 128>}]} {
    %c0 = arith.constant 0 : index
    %c0_0 = arith.constant 0 : index
    %0 = vector.load %arg1[%c0, %c0_0] : memref<8x8xi32, #tpu.memory_space<vmem>>, vector<8x8xi32>
    %1 = tpu.iota {dimensions = array<i32: 2>} : vector<8x8x128xi32>
    %2 = vector.shape_cast %0 : vector<8x8xi32> to vector<8x8x1xi32>
    %3 = vector.broadcast %2 : vector<8x8x1xi32> to vector<8x8x128xi32>
    %4 = arith.cmpi eq, %3, %1 : vector<8x8x128xi32>
    %5 = arith.extui %4 : vector<8x8x128xi1> to vector<8x8x128xi32>
    %6 = arith.sitofp %5 : vector<8x8x128xi32> to vector<8x8x128xf32>
    %c0_1 = arith.constant 0 : index
    %c0_2 = arith.constant 0 : index
    %7 = vector.load %arg3[%c0_1, %c0_2] : memref<1x128xf32, #tpu.memory_space<vmem>>, vector<1x128xf32>
    %8 = vector.shape_cast %7 : vector<1x128xf32> to vector<1x1x128xf32>
    %9 = vector.broadcast %8 : vector<1x1x128xf32> to vector<8x8x128xf32>
    %10 = arith.mulf %6, %9 : vector<8x8x128xf32>
    %cst = arith.constant dense<0.000000e+00> : vector<8x8xf32>
    %11 = vector.multi_reduction <add>, %10, %cst [2] : vector<8x8x128xf32> to vector<8x8xf32>
    %cst_3 = arith.constant dense<0xFF800000> : vector<8xf32>
    %12 = vector.multi_reduction <maximumf>, %11, %cst_3 [1] : vector<8x8xf32> to vector<8xf32>
    %13 = vector.shape_cast %12 : vector<8xf32> to vector<8x1xf32>
    %14 = vector.broadcast %13 : vector<8x1xf32> to vector<8x8xf32>
    %15 = arith.subf %11, %14 : vector<8x8xf32>
    %16 = math.exp %15 : vector<8x8xf32>
    %cst_4 = arith.constant dense<0.000000e+00> : vector<8xf32>
    %17 = vector.multi_reduction <add>, %16, %cst_4 [1] : vector<8x8xf32> to vector<8xf32>
    %18 = vector.shape_cast %17 : vector<8xf32> to vector<8x1xf32>
    %19 = vector.shape_cast %16 : vector<8x8xf32> to vector<8x8x1xf32>
    %20 = vector.broadcast %19 : vector<8x8x1xf32> to vector<8x8x128xf32>
    %21 = arith.mulf %6, %20 : vector<8x8x128xf32>
    %cst_5 = arith.constant dense<0.000000e+00> : vector<8x128xf32>
    %22 = vector.multi_reduction <add>, %21, %cst_5 [1] : vector<8x8x128xf32> to vector<8x128xf32>
    %c0_6 = arith.constant 0 : index
    %c0_7 = arith.constant 0 : index
    %23 = vector.load %arg2[%c0_6, %c0_7] : memref<128x128xf32, #tpu.memory_space<vmem>>, vector<128x128xf32>
    %cst_8 = arith.constant dense<0.000000e+00> : vector<8x128xf32>
    %24 = tpu.matmul %22, %23, %cst_8 {dimension_numbers = #tpu.dot_dimension_numbers<[1], [0], [0], [1], [0, 0, 1, 1], [], []>} : vector<8x128xf32>, vector<128x128xf32>, vector<8x128xf32> -> vector<8x128xf32>
    %25 = tpu.reciprocal %18 {approx = true} : vector<8x1xf32> -> vector<8x1xf32>
    %26 = vector.broadcast %25 : vector<8x1xf32> to vector<8x128xf32>
    %27 = arith.mulf %24, %26 : vector<8x128xf32>
    %28 = math.tanh %27 : vector<8x128xf32>
    %c0_9 = arith.constant 0 : index
    %c0_10 = arith.constant 0 : index
    %29 = vector.load %arg4[%c0_9, %c0_10] : memref<8x128xf32, #tpu.memory_space<vmem>>, vector<8x128xf32>
    tpu.vector_store %arg4[%c0_9, %c0_10], %28 {strides = array<i32>} : memref<8x128xf32, #tpu.memory_space<vmem>>, vector<8x128xf32>,
    return
  }
  func.func @transform_0(%arg0: i32) -> (i32, i32) {
    %c0_i32 = arith.constant 0 : i32
    %c0_i32_0 = arith.constant 0 : i32
    return %arg0, %c0_i32 : i32, i32
  }
  func.func @transform_1(%arg0: i32) -> (i32, i32) {
    %c0_i32 = arith.constant 0 : i32
    %c0_i32_0 = arith.constant 0 : i32
    %c0_i32_1 = arith.constant 0 : i32
    return %c0_i32, %c0_i32_0 : i32, i32
  }
  func.func @transform_2(%arg0: i32) -> (i32, i32) {
    %c0_i32 = arith.constant 0 : i32
    %c0_i32_0 = arith.constant 0 : i32
    %c0_i32_1 = arith.constant 0 : i32
    return %c0_i32, %c0_i32_0 : i32, i32
  }
  func.func @transform_3(%arg0: i32) -> (i32, i32) {
    %c0_i32 = arith.constant 0 : i32
    %c0_i32_0 = arith.constant 0 : i32
    return %arg0, %c0_i32 : i32, i32
  }
}

</mosaic_0001>

<llo_original>
// kernel: tpu_custom_call.1
$region0: #{tpu_custom_call.1}
  #allocation0 [shape = 'u32[]', space=smem, size = 0x4, offset = 0x4, fixed_abs, tag = 'smem constant byte address 0x4 - core index']
  #allocation1 [shape = 'u32[72,128]{1,0:T(1,128)}', space=vmem, size = 0x9000, scoped, tag = 'internal scratch']
  %s0 = inlined_call_operand.hbm [shape: s32[8,8], index: 0, kind: input, shape index: {}]
  %s1 = inlined_call_operand.hbm [shape: f32[128,128], index: 1, kind: input, shape index: {}]
  %s2 = inlined_call_operand.vmem [shape: f32[1,128], index: 2, kind: input, shape index: {}]
  %s3 = inlined_call_operand.hbm [shape: f32[8,128], index: 3, kind: output, shape index: {}]
  %s4 = sld [smem:[#allocation0]]
  $region30: #{tpu_custom_call.1} parent=0
    _
  %s6 = ssub.s32 1, %s4
  %s7 = scalar_select 0, %s6, %s4
  $region1: #{tpu_custom_call.1} parent=0
    #allocation2 [shape = 'u8[4096]{0}', space=vmem, size = 0x1000, scoped, tag = 'input window, operand 0, single buffered']
    #allocation3 [shape = 's32[1]{0}', space=sflag, size = 0x4, scoped, tag = 'scoped memory for tpu_custom_call.1']
    #allocation4 [shape = 's32[1]{0}', space=sflag, size = 0x4, scoped, tag = 'scoped memory for tpu_custom_call.1']
    #allocation5 [shape = 'u8[65536]{0}', space=vmem, size = 0x10000, scoped, tag = 'input window, operand 1, single buffered']
    #allocation6 [shape = 's32[1]{0}', space=sflag, size = 0x4, scoped, tag = 'scoped memory for tpu_custom_call.1']
    #allocation7 [shape = 'u8[4096]{0}', space=vmem, size = 0x1000, scoped, tag = 'output window, operand 0, single buffered']
    %8 = vsyncpa [#allocation3], 0
    %9 = vsyncpa [#allocation6], 0
    %10 = vsyncpa [#allocation4], 0
    // Predicated region
    $region2: #{tpu_custom_call.1} parent=1 // pred_check
      _
    $region3: #{tpu_custom_call.1} parent=1 // pred_check_branch
      %12 = sbr.rel (0) target = $region5
    $region4: #{tpu_custom_call.1} parent=1 // pred_region
      %14 = vsyncadd [#allocation3], 0
      %s16 = sshll.u32 %s0, 4
      %s17 = int_to_ptr.hbm [resolvable:$true] %s16
      %s18 = sshll.u32 [#allocation2], 4
      %s19 = int_to_ptr.vmem [resolvable:$true] %s18
      %21 = dma.hbm_to_vmem [thread:$0]  %s17, 128, %s19, [#allocation3]
    $region5: #{tpu_custom_call.1} parent=1 // pred_fallthru
      _
    // Predicated region
    $region6: #{tpu_custom_call.1} parent=1 // pred_check
      _
    $region7: #{tpu_custom_call.1} parent=1 // pred_check_branch
      %23 = sbr.rel (0) target = $region9
    $region8: #{tpu_custom_call.1} parent=1 // pred_region
      %25 = vsyncadd [#allocation6], 0
      %s26 = sshll.u32 %s1, 4
      %s27 = int_to_ptr.hbm [resolvable:$true] %s26
      %s28 = sshll.u32 [#allocation5], 4
      %s29 = int_to_ptr.vmem [resolvable:$true] %s28
      %34 = dma.hbm_to_vmem [thread:$0]  %s27, 2048, %s29, [#allocation6], 128, 128, 8
    $region9: #{tpu_custom_call.1} parent=1 // pred_fallthru
      _
    // Predicated region
    $region10: #{tpu_custom_call.1} parent=1 // pred_check
      _
    $region11: #{tpu_custom_call.1} parent=1 // pred_check_branch
      %36 = sbr.rel (0) target = $region13
    $region12: #{tpu_custom_call.1} parent=1 // pred_region
      _
    $region13: #{tpu_custom_call.1} parent=1 // pred_fallthru
      _
    // Predicated region
    $region14: #{tpu_custom_call.1} parent=1 // pred_check
      _
    $region15: #{tpu_custom_call.1} parent=1 // pred_check_branch
      %38 = sbr.rel (0) target = $region17
    $region16: #{tpu_custom_call.1} parent=1 // pred_region
      %40 = dma.done [#allocation3], 128
    $region17: #{tpu_custom_call.1} parent=1 // pred_fallthru
      _
    // Predicated region
    $region18: #{tpu_custom_call.1} parent=1 // pred_check
      _
    $region19: #{tpu_custom_call.1} parent=1 // pred_check_branch
      %42 = sbr.rel (0) target = $region21
    $region20: #{tpu_custom_call.1} parent=1 // pred_region
      %44 = dma.done [#allocation6], 2048
    $region21: #{tpu_custom_call.1} parent=1 // pred_fallthru
      _
    %v45 = vld [vmem:[#allocation2] sm:$0xff]
    %v46 = vlaneseq
    %v47 = vand.u32 %v46, 127
    %v48 = vperm.slane %v45, 0
    %v49 = vlaneseq
    %v50 = vshrl.u32 %v49, 7
    %52 = vset.pattern.permute.xlu0 %v50
    %53 = vperm.xlu0 %52, %v48
    %v54 = vpop.permute.xlu0 %53
    %v55 = vperm.slane %v45, 1
    %v56 = vlaneseq
    %v57 = vshrl.u32 %v56, 7
    %59 = vset.pattern.permute.xlu0 %v57
    %60 = vperm.xlu0 %59, %v55
    %v61 = vpop.permute.xlu0 %60
    %v62 = vperm.slane %v45, 2
    %v63 = vlaneseq
    %v64 = vshrl.u32 %v63, 7
    %66 = vset.pattern.permute.xlu0 %v64
    %67 = vperm.xlu0 %66, %v62
    %v68 = vpop.permute.xlu0 %67
    %v69 = vperm.slane %v45, 3
    %v70 = vlaneseq
    %v71 = vshrl.u32 %v70, 7
    %73 = vset.pattern.permute.xlu0 %v71
    %74 = vperm.xlu0 %73, %v69
    %v75 = vpop.permute.xlu0 %74
    %v76 = vperm.slane %v45, 4
    %v77 = vlaneseq
    %v78 = vshrl.u32 %v77, 7
    %80 = vset.pattern.permute.xlu0 %v78
    %81 = vperm.xlu0 %80, %v76
    %v82 = vpop.permute.xlu0 %81
    %v83 = vperm.slane %v45, 5
    %v84 = vlaneseq
    %v85 = vshrl.u32 %v84, 7
    %87 = vset.pattern.permute.xlu0 %v85
    %88 = vperm.xlu0 %87, %v83
    %v89 = vpop.permute.xlu0 %88
    %v90 = vperm.slane %v45, 6
    %v91 = vlaneseq
    %v92 = vshrl.u32 %v91, 7
    %94 = vset.pattern.permute.xlu0 %v92
    %95 = vperm.xlu0 %94, %v90
    %v96 = vpop.permute.xlu0 %95
    %v97 = vperm.slane %v45, 7
    %v98 = vlaneseq
    %v99 = vshrl.u32 %v98, 7
    %101 = vset.pattern.permute.xlu0 %v99
    %102 = vperm.xlu0 %101, %v97
    %v103 = vpop.permute.xlu0 %102
    %vm104 = vcmp.eq.s32.totalorder %v54, %v47
    %vm105 = vcmp.eq.s32.totalorder %v61, %v47
    %vm106 = vcmp.eq.s32.totalorder %v68, %v47
    %vm107 = vcmp.eq.s32.totalorder %v75, %v47
    %vm108 = vcmp.eq.s32.totalorder %v82, %v47
    %vm109 = vcmp.eq.s32.totalorder %v89, %v47
    %vm110 = vcmp.eq.s32.totalorder %v96, %v47
    %vm111 = vcmp.eq.s32.totalorder %v103, %v47
    %v112 = vsel %vm104, 1, 0
    %v113 = vsel %vm105, 1, 0
    %v114 = vsel %vm106, 1, 0
    %v115 = vsel %vm107, 1, 0
    %v116 = vsel %vm108, 1, 0
    %v117 = vsel %vm109, 1, 0
    %v118 = vsel %vm110, 1, 0
    %v119 = vsel %vm111, 1, 0
    %v120 = vcvt.s32.f32 %v112
    %v121 = vcvt.s32.f32 %v113
    %v122 = vcvt.s32.f32 %v114
    %v123 = vcvt.s32.f32 %v115
    %v124 = vcvt.s32.f32 %v116
    %v125 = vcvt.s32.f32 %v117
    %v126 = vcvt.s32.f32 %v118
    %v127 = vcvt.s32.f32 %v119
    %v128 = vld [vmem:[%s2] sm:$0x1]
    %v130 = vperm.slane %v128, 0
    %v132 = vmul.f32 %v120, %v130
    %v133 = vmul.f32 %v121, %v130
    %v134 = vmul.f32 %v122, %v130
    %v135 = vmul.f32 %v123, %v130
    %v136 = vmul.f32 %v124, %v130
    %v137 = vmul.f32 %v125, %v130
    %v138 = vmul.f32 %v126, %v130
    %v139 = vmul.f32 %v127, %v130
    %140 = vadd.xlane.f32.xlu0 %v132
    %v141 = vpop.xlane.xlu0 %140
    %142 = vadd.xlane.f32.xlu0 %v133
    %v143 = vpop.xlane.xlu0 %142
    %144 = vadd.xlane.f32.xlu0 %v134
    %v145 = vpop.xlane.xlu0 %144
    %146 = vadd.xlane.f32.xlu0 %v135
    %v147 = vpop.xlane.xlu0 %146
    %148 = vadd.xlane.f32.xlu0 %v136
    %v149 = vpop.xlane.xlu0 %148
    %150 = vadd.xlane.f32.xlu0 %v137
    %v151 = vpop.xlane.xlu0 %150
    %152 = vadd.xlane.f32.xlu0 %v138
    %v153 = vpop.xlane.xlu0 %152
    %154 = vadd.xlane.f32.xlu0 %v139
    %v155 = vpop.xlane.xlu0 %154
    %v164 = vperm.slane %v141, %v47
    %v165 = vperm.slane %v143, %v47
    %v166 = vperm.slane %v145, %v47
    %v167 = vperm.slane %v147, %v47
    %v168 = vperm.slane %v149, %v47
    %v169 = vperm.slane %v151, %v47
    %v170 = vperm.slane %v153, %v47
    %v171 = vperm.slane %v155, %v47
    %vm172 = vcmask 1041409
    %v173 = vsel %vm172, %v165, %v164
    %vm174 = vcmask 1042434
    %v175 = vsel %vm174, %v166, %v173
    %vm176 = vcmask 1043459
    %v177 = vsel %vm176, %v167, %v175
    %vm178 = vcmask 1044484
    %v179 = vsel %vm178, %v168, %v177
    %vm180 = vcmask 1045509
    %v181 = vsel %vm180, %v169, %v179
    %vm182 = vcmask 1046534
    %v183 = vsel %vm182, %v170, %v181
    %vm184 = vcmask 1047559
    %v185 = vsel %vm184, %v171, %v183
    %vm187 = vcmask 64512
    %v188 = vsel %vm187, %v185, -inf
    %189 = vmax.xlane.f32.xlu0 %v188
    %v190 = vpop.xlane.xlu0 %189
    %v192 = vperm.slane %v190, 0
    %v193 = vperm.slane %v190, 1
    %v194 = vperm.slane %v190, 2
    %v195 = vperm.slane %v190, 3
    %v196 = vperm.slane %v190, 4
    %v197 = vperm.slane %v190, 5
    %v198 = vperm.slane %v190, 6
    %v199 = vperm.slane %v190, 7
    %v208 = vsub.f32 %v141, %v192
    %v209 = vsub.f32 %v143, %v193
    %v210 = vsub.f32 %v145, %v194
    %v211 = vsub.f32 %v147, %v195
    %v212 = vsub.f32 %v149, %v196
    %v213 = vsub.f32 %v151, %v197
    %v214 = vsub.f32 %v153, %v198
    %v215 = vsub.f32 %v155, %v199
    %v216 = vmul.f32 %v208, 1.442695
    %v217 = vpow.pop %v216
    %v218 = vmul.f32 %v209, 1.442695
    %v219 = vpow.pop %v218
    %v220 = vmul.f32 %v210, 1.442695
    %v221 = vpow.pop %v220
    %v222 = vmul.f32 %v211, 1.442695
    %v223 = vpow.pop %v222
    %v224 = vmul.f32 %v212, 1.442695
    %v225 = vpow.pop %v224
    %v226 = vmul.f32 %v213, 1.442695
    %v227 = vpow.pop %v226
    %v228 = vmul.f32 %v214, 1.442695
    %v229 = vpow.pop %v228
    %v230 = vmul.f32 %v215, 1.442695
    %v231 = vpow.pop %v230
    %240 = vset.pattern.permute.xlu0 0
    %241 = vperm.xlu0 %240, %v217
    %v242 = vpop.permute.xlu0 %241
    %243 = vset.pattern.permute.xlu0 0
    %244 = vperm.xlu0 %243, %v219
    %v245 = vpop.permute.xlu0 %244
    %246 = vset.pattern.permute.xlu0 0
    %247 = vperm.xlu0 %246, %v221
    %v248 = vpop.permute.xlu0 %247
    %249 = vset.pattern.permute.xlu0 0
    %250 = vperm.xlu0 %249, %v223
    %v251 = vpop.permute.xlu0 %250
    %252 = vset.pattern.permute.xlu0 0
    %253 = vperm.xlu0 %252, %v225
    %v254 = vpop.permute.xlu0 %253
    %255 = vset.pattern.permute.xlu0 0
    %256 = vperm.xlu0 %255, %v227
    %v257 = vpop.permute.xlu0 %256
    %258 = vset.pattern.permute.xlu0 0
    %259 = vperm.xlu0 %258, %v229
    %v260 = vpop.permute.xlu0 %259
    %261 = vset.pattern.permute.xlu0 0
    %262 = vperm.xlu0 %261, %v231
    %v263 = vpop.permute.xlu0 %262
    %v264 = vperm.slane %v242, %v47
    %v265 = vperm.slane %v245, %v47
    %v266 = vperm.slane %v248, %v47
    %v267 = vperm.slane %v251, %v47
    %v268 = vperm.slane %v254, %v47
    %v269 = vperm.slane %v257, %v47
    %v270 = vperm.slane %v260, %v47
    %v271 = vperm.slane %v263, %v47
    %v272 = vsel %vm172, %v265, %v264
    %v273 = vsel %vm174, %v266, %v272
    %v274 = vsel %vm176, %v267, %v273
    %v275 = vsel %vm178, %v268, %v274
    %v276 = vsel %vm180, %v269, %v275
    %v277 = vsel %vm182, %v270, %v276
    %v278 = vsel %vm184, %v271, %v277
    %v280 = vsel %vm187, %v278, 0.0
    %281 = vadd.xlane.f32.xlu0 %v280
    %v282 = vpop.xlane.xlu0 %281
    %v291 = vmul.f32 %v120, %v242
    %v292 = vmul.f32 %v121, %v245
    %v293 = vmul.f32 %v122, %v248
    %v294 = vmul.f32 %v123, %v251
    %v295 = vmul.f32 %v124, %v254
    %v296 = vmul.f32 %v125, %v257
    %v297 = vmul.f32 %v126, %v260
    %v298 = vmul.f32 %v127, %v263
    %v299 = vrot.slane %v291, 4
    %v300 = vadd.f32 %v291, %v299
    %v301 = vrot.slane %v300, 2
    %v302 = vadd.f32 %v300, %v301
    %v303 = vrot.slane %v302, 1
    %v304 = vadd.f32 %v302, %v303
    %v305 = vrot.slane %v292, 4
    %v306 = vadd.f32 %v292, %v305
    %v307 = vrot.slane %v306, 2
    %v308 = vadd.f32 %v306, %v307
    %v309 = vrot.slane %v308, 1
    %v310 = vadd.f32 %v308, %v309
    %v311 = vrot.slane %v293, 4
    %v312 = vadd.f32 %v293, %v311
    %v313 = vrot.slane %v312, 2
    %v314 = vadd.f32 %v312, %v313
    %v315 = vrot.slane %v314, 1
    %v316 = vadd.f32 %v314, %v315
    %v317 = vrot.slane %v294, 4
    %v318 = vadd.f32 %v294, %v317
    %v319 = vrot.slane %v318, 2
    %v320 = vadd.f32 %v318, %v319
    %v321 = vrot.slane %v320, 1
    %v322 = vadd.f32 %v320, %v321
    %v323 = vrot.slane %v295, 4
    %v324 = vadd.f32 %v295, %v323
    %v325 = vrot.slane %v324, 2
    %v326 = vadd.f32 %v324, %v325
    %v327 = vrot.slane %v326, 1
    %v328 = vadd.f32 %v326, %v327
    %v329 = vrot.slane %v296, 4
    %v330 = vadd.f32 %v296, %v329
    %v331 = vrot.slane %v330, 2
    %v332 = vadd.f32 %v330, %v331
    %v333 = vrot.slane %v332, 1
    %v334 = vadd.f32 %v332, %v333
    %v335 = vrot.slane %v297, 4
    %v336 = vadd.f32 %v297, %v335
    %v337 = vrot.slane %v336, 2
    %v338 = vadd.f32 %v336, %v337
    %v339 = vrot.slane %v338, 1
    %v340 = vadd.f32 %v338, %v339
    %v341 = vrot.slane %v298, 4
    %v342 = vadd.f32 %v298, %v341
    %v343 = vrot.slane %v342, 2
    %v344 = vadd.f32 %v342, %v343
    %v345 = vrot.slane %v344, 1
    %v346 = vadd.f32 %v344, %v345
    %v347 = vld [vmem:[#allocation5] sm:$0xff]
    %v348 = vld [vmem:[#allocation5 + $0x8] sm:$0xff]
    %v349 = vld [vmem:[#allocation5 + $0x10] sm:$0xff]
    %v350 = vld [vmem:[#allocation5 + $0x18] sm:$0xff]
    %v351 = vld [vmem:[#allocation5 + $0x20] sm:$0xff]
    %v352 = vld [vmem:[#allocation5 + $0x28] sm:$0xff]
    %v353 = vld [vmem:[#allocation5 + $0x30] sm:$0xff]
    %v354 = vld [vmem:[#allocation5 + $0x38] sm:$0xff]
    %v355 = vld [vmem:[#allocation5 + $0x40] sm:$0xff]
    %v356 = vld [vmem:[#allocation5 + $0x48] sm:$0xff]
    %v357 = vld [vmem:[#allocation5 + $0x50] sm:$0xff]
    %v358 = vld [vmem:[#allocation5 + $0x58] sm:$0xff]
    %v359 = vld [vmem:[#allocation5 + $0x60] sm:$0xff]
    %v360 = vld [vmem:[#allocation5 + $0x68] sm:$0xff]
    %v361 = vld [vmem:[#allocation5 + $0x70] sm:$0xff]
    %v362 = vld [vmem:[#allocation5 + $0x78] sm:$0xff]
    %v371 = vsel %vm172, %v310, %v304
    %v372 = vsel %vm174, %v316, %v371
    %v373 = vsel %vm176, %v322, %v372
    %v374 = vsel %vm178, %v328, %v373
    %v375 = vsel %vm180, %v334, %v374
    %v376 = vsel %vm182, %v340, %v375
    %v377 = vsel %vm184, %v346, %v376
    %379 = vmatpush.msra.mxu0 %v362
    %380 = vmatpush.msra.mxu0 %v361
    %381 = vmatpush.msra.mxu0 %v360
    %382 = vmatpush.msra.mxu0 %v359
    %383 = vmatpush.msra.mxu0 %v358
    %384 = vmatpush.msra.mxu0 %v357
    %385 = vmatpush.msra.mxu0 %v356
    %386 = vmatpush.msra.mxu0 %v355
    %387 = vmatpush.msra.mxu0 %v354
    %388 = vmatpush.msra.mxu0 %v353
    %389 = vmatpush.msra.mxu0 %v352
    %390 = vmatpush.msra.mxu0 %v351
    %391 = vmatpush.msra.mxu0 %v350
    %392 = vmatpush.msra.mxu0 %v349
    %393 = vmatpush.msra.mxu0 %v348
    %394 = vmatpush.msra.mxu0 %v347
    %395 = vmatmul.f32.gmra.mxu0 %v377
    %v396 = vpop.f32.mrf.mxu0
    %v397 = vadd.f32 0.0, %v396
    %398 = vdwg.mxu0
    %v399 = vrcp.pop %v282
    %v400 = vmul.f32 %v397, %v399
    %v401 = vtanh.pop %v400
    %402 = vst [vmem:[#allocation7] sm:$0xff] %v401
    // Predicated region
    $region22: #{tpu_custom_call.1} parent=1 // pred_check
      _
    $region23: #{tpu_custom_call.1} parent=1 // pred_check_branch
      %404 = sbr.rel (0) target = $region25
    $region24: #{tpu_custom_call.1} parent=1 // pred_region
      %406 = vsyncadd [#allocation4], 0
      %s408 = sshll.u32 [#allocation7], 4
      %s409 = int_to_ptr.vmem [resolvable:$true] %s408
      %s410 = sshll.u32 %s3, 4
      %s411 = int_to_ptr.hbm [resolvable:$true] %s410
      %413 = dma.vmem_to_hbm [thread:$0]  %s409, 128, %s411, [#allocation4]
    $region25: #{tpu_custom_call.1} parent=1 // pred_fallthru
      _
    // Predicated region
    $region26: #{tpu_custom_call.1} parent=1 // pred_check
      _
    $region27: #{tpu_custom_call.1} parent=1 // pred_check_branch
      %415 = sbr.rel (0) target = $region29
    $region28: #{tpu_custom_call.1} parent=1 // pred_region
      %417 = dma.done [#allocation4], 128
    $region29: #{tpu_custom_call.1} parent=1 // pred_fallthru
      _
    %418 = vsyncpa [#allocation3], 1
    %419 = vsyncpa [#allocation6], 1
    %420 = vsyncpa [#allocation4], 1

</llo_original>
